<compile_context>
chip_gen: v6e
topology: v6e:2x2x1
jax: 0.10.0
libtpu: 0.0.40
codegen_flags: <defaults>
</compile_context>

<pallas_src>
import functools
import math

import jax
import jax.numpy as jnp
from jax import lax
from jax.experimental import pallas as pl
from jax.experimental.pallas import tpu as pltpu


def _round_up(n, m):
    return ((n + m - 1) // m) * m


def _vmem_budget_bytes():
    """Per-chip VMEM limit with headroom for Mosaic internal scratch."""
    try:
        info = pltpu.get_tpu_info()
        cap = int(getattr(info, "vmem_capacity_bytes", 0) or 0)
        if cap > 0:
            return max(32 << 20, min(cap - (12 << 20), 100 << 20))
    except Exception:
        pass
    return 48 << 20  # safe fallback on every generation (v7x only has 64 MiB physical)


def _choose_tm(rows, tm_default):
    rows8 = _round_up(rows, 8)
    if rows8 <= 256:
        return rows8  # one small tile; per-step overhead dominates anyway
    # >= 2 row tiles so v7x can shard across both TensorCores; 256-aligned for the MXU.
    tm = min(tm_default, _round_up(pl.cdiv(rows8, 2), 256))
    return max(256, tm)


def _working_set_bytes(tm, tff, n_chunks, d_model, act_bytes):
    """Rough VMEM footprint estimate used to pick the d_ff chunk width."""
    wbuf = 1 if n_chunks == 1 else 2            # weight chunks double-buffer only when streamed
    x_out = 2 * (2 * tm * d_model * act_bytes)  # x + out tiles, double-buffered
    scratch = tm * d_model * (act_bytes + 4)    # norm scratch + f32 accumulator
    weights = wbuf * (2 * d_model * tff + tff) * act_bytes
    inter = tm * tff * (4 + act_bytes)          # f32 first-matmul result + cast copy
    small = 6 * d_model * act_bytes
    return x_out + scratch + weights + inter + small


def _ffn_kernel(x_ref, gamma_ref, beta_ref, w1_ref, b1_ref, w2_ref, b2_ref,
                o_ref, norm_ref, acc_ref, *, eps):
    j = pl.program_id(1)

    # LayerNorm once per row tile (first d_ff chunk); stats in f32, result stored in the
    # native activation dtype so the MXU gets its fast path.
    @pl.when(j == 0)
    def _():
        x = x_ref[...].astype(jnp.float32)
        mean = jnp.mean(x, axis=-1, keepdims=True)
        centered = x - mean
        var = jnp.mean(centered * centered, axis=-1, keepdims=True)  # biased, like torch
        norm = centered * lax.rsqrt(var + eps)
        norm = gamma_ref[...].astype(jnp.float32) * norm + beta_ref[...].astype(jnp.float32)
        norm_ref[...] = norm.astype(norm_ref.dtype)
        acc_ref[...] = jnp.zeros_like(acc_ref)

    # w_1 chunk + ReLU (dropout_1 is identity in eval mode); native-dtype MXU operands,
    # f32 accumulation.
    h = jnp.dot(norm_ref[...], w1_ref[...], preferred_element_type=jnp.float32)
    h = jnp.maximum(h + b1_ref[...].astype(jnp.float32), 0.0)

    # w_2 chunk (dropout_2 is identity): accumulate into the f32 scratch accumulator.
    acc_ref[...] += jnp.dot(h.astype(w2_ref.dtype), w2_ref[...],
                            preferred_element_type=jnp.float32)

    @pl.when(j == pl.num_programs(1) - 1)
    def _():
        o_ref[...] = (acc_ref[...] + b2_ref[...].astype(jnp.float32)).astype(o_ref.dtype)


def position_wise_feed_forward(x, w1, b1, w2, b2, gamma, beta, *, eps=1e-12, tm=512):
    """Fused LayerNorm -> Linear -> ReLU -> Linear (dropout = identity, eval mode)."""
    orig_shape = x.shape
    d_model = orig_shape[-1]
    d_ff = w1.shape[-1]
    rows = math.prod(orig_shape[:-1])
    act_bytes = jnp.dtype(x.dtype).itemsize

    x2 = x.reshape(rows, d_model)
    gamma2 = gamma.reshape(1, d_model)
    beta2 = beta.reshape(1, d_model)
    b1_2 = b1.reshape(1, d_ff)
    b2_2 = b2.reshape(1, d_model)

    tm = _choose_tm(rows, tm)
    n_row_tiles = pl.cdiv(rows, tm)  # partial last block: OOB rows are simply dropped

    vmem_limit = _vmem_budget_bytes()
    budget = int(vmem_limit * 0.85)

    # d_ff chunk width: keep the whole d_ff (weights resident) if it fits the budget,
    # otherwise stream 128-aligned chunks over a second ("arbitrary") grid axis.
    n_chunks, tff = 1, d_ff
    while _working_set_bytes(tm, tff, n_chunks, d_model, act_bytes) > budget and tff > 128:
        n_chunks += 1
        tff = _round_up(pl.cdiv(d_ff, n_chunks), 128)
    n_chunks = pl.cdiv(d_ff, tff)
    d_ff_p = n_chunks * tff
    if d_ff_p != d_ff:
        # Zero-pad the weights' d_ff axis so chunks tile it exactly. Zeros are exact:
        # relu(0 + 0) = 0 contributes nothing through the matching zero rows of W2.
        pad = d_ff_p - d_ff
        w1 = jnp.pad(w1, ((0, 0), (0, pad)))
        b1_2 = jnp.pad(b1_2, ((0, 0), (0, pad)))
        w2 = jnp.pad(w2, ((0, pad), (0, 0)))

    resident = n_chunks == 1
    const_buf = pl.Buffered(1)                # single-buffer never-changing blocks
    w_buf = const_buf if resident else None   # streamed chunks keep double-buffering

    def _spec(shape, index_map, buf):
        if buf is None:
            return pl.BlockSpec(shape, index_map)
        return pl.BlockSpec(shape, index_map, pipeline_mode=buf)

    kernel = functools.partial(_ffn_kernel, eps=eps)

    out = pl.pallas_call(
        kernel,
        out_shape=jax.ShapeDtypeStruct((rows, d_model), x.dtype),
        grid_spec=pltpu.PrefetchScalarGridSpec(
            num_scalar_prefetch=0,
            grid=(n_row_tiles, n_chunks),
            in_specs=[
                pl.BlockSpec((tm, d_model), lambda i, j: (i, 0)),       # x row tile
                _spec((1, d_model), lambda i, j: (0, 0), const_buf),    # gamma
                _spec((1, d_model), lambda i, j: (0, 0), const_buf),    # beta
                _spec((d_model, tff), lambda i, j: (0, j), w_buf),      # W1 chunk
                _spec((1, tff), lambda i, j: (0, j), w_buf),            # b1 chunk
                _spec((tff, d_model), lambda i, j: (j, 0), w_buf),      # W2 chunk
                _spec((1, d_model), lambda i, j: (0, 0), const_buf),    # b2
            ],
            out_specs=pl.BlockSpec((tm, d_model), lambda i, j: (i, 0)),
            scratch_shapes=[
                pltpu.VMEM((tm, d_model), x.dtype),      # LayerNorm(x) tile (native dtype)
                pltpu.VMEM((tm, d_model), jnp.float32),  # f32 output accumulator
            ],
        ),
        compiler_params=pltpu.CompilerParams(
            dimension_semantics=("parallel", "arbitrary"),
            vmem_limit_bytes=int(vmem_limit),
        ),
    )(x2, gamma2, beta2, w1, b1_2, w2, b2_2)

    return out.reshape(orig_shape)


if __name__ == "__main__":
    # Small but lane-dense demo shapes (d_model / d_ff multiples of 128 keep stores unmasked).
    B, S, D, D_FF = 2, 24, 128, 512
    key = jax.random.PRNGKey(0)
    kx, kw1, kb1, kw2, kb2 = jax.random.split(key, 5)

    x = jax.random.normal(kx, (B, S, D), dtype=jnp.float32)

    # Parameters (torch Linear stores W as (out, in); here we keep (in, out) directly).
    W1 = jax.random.normal(kw1, (D, D_FF), dtype=jnp.float32) * 0.1
    b1 = jax.random.normal(kb1, (D_FF,), dtype=jnp.float32) * 0.1
    W2 = jax.random.normal(kw2, (D_FF, D), dtype=jnp.float32) * 0.1
    b2 = jax.random.normal(kb2, (D,), dtype=jnp.float32) * 0.1
    gamma = jnp.ones((D,), dtype=jnp.float32)   # LayerNorm weight init
    beta = jnp.zeros((D,), dtype=jnp.float32)   # LayerNorm bias init

    out = position_wise_feed_forward(x, W1, b1, W2, b2, gamma, beta)
    out = jax.block_until_ready(out)

    # Pure-JAX reference of the PyTorch forward (eval mode), high-precision matmuls.
    mean = x.mean(-1, keepdims=True)
    var = ((x - mean) ** 2).mean(-1, keepdims=True)
    norm = gamma * (x - mean) / jnp.sqrt(var + 1e-12) + beta
    inter = jnp.maximum(
        jnp.einsum("bsd,df->bsf", norm, W1, precision=jax.lax.Precision.HIGHEST) + b1, 0.0)
    ref = jnp.einsum("bsf,fd->bsd", inter, W2, precision=jax.lax.Precision.HIGHEST) + b2

    assert out.shape == ref.shape
    # Kernel matmuls use the MXU's default (fast-path) precision with native-dtype operands
    # and f32 accumulation; tolerance is sized for that vs. the HIGHEST-precision reference.
    assert jnp.allclose(out, ref, atol=3e-2, rtol=3e-2), "mismatch vs reference"

    print("KERNEL_OK")
</pallas_src>

<mosaic_0001>
module attributes {stable_mosaic.version = 11 : i64} {
  func.func @_ffn_kernel(%arg0: i32, %arg1: i32, %arg2: memref<48x128xf32, #tpu.memory_space<vmem>>, %arg3: memref<1x128xf32, #tpu.memory_space<vmem>>, %arg4: memref<1x128xf32, #tpu.memory_space<vmem>>, %arg5: memref<128x512xf32, #tpu.memory_space<vmem>>, %arg6: memref<1x512xf32, #tpu.memory_space<vmem>>, %arg7: memref<512x128xf32, #tpu.memory_space<vmem>>, %arg8: memref<1x128xf32, #tpu.memory_space<vmem>>, %arg9: memref<48x128xf32, #tpu.memory_space<vmem>>, %arg10: memref<48x128xf32, #tpu.memory_space<vmem>>, %arg11: memref<48x128xf32, #tpu.memory_space<vmem>>) attributes {dimension_semantics = [#tpu.dimension_semantics<parallel>, #tpu.dimension_semantics<arbitrary>], iteration_bounds = array<i64: 1, 1>, scalar_prefetch = 0 : i64, scratch_operands = 2 : i64, tpu.core_type = #tpu.core_type<tc>, window_params = [{transform_indices = @transform_0, window_bounds = array<i64: 48, 128>}, {pipeline_mode = #tpu.pipeline_mode<synchronous>, transform_indices = @transform_1, window_bounds = array<i64: 1, 128>}, {pipeline_mode = #tpu.pipeline_mode<synchronous>, transform_indices = @transform_2, window_bounds = array<i64: 1, 128>}, {pipeline_mode = #tpu.pipeline_mode<synchronous>, transform_indices = @transform_3, window_bounds = array<i64: 128, 512>}, {pipeline_mode = #tpu.pipeline_mode<synchronous>, transform_indices = @transform_4, window_bounds = array<i64: 1, 512>}, {pipeline_mode = #tpu.pipeline_mode<synchronous>, transform_indices = @transform_5, window_bounds = array<i64: 512, 128>}, {pipeline_mode = #tpu.pipeline_mode<synchronous>, transform_indices = @transform_6, window_bounds = array<i64: 1, 128>}, {transform_indices = @transform_7, window_bounds = array<i64: 48, 128>}]} {
    %c0_i32 = arith.constant 0 : i32
    %0 = arith.cmpi eq, %arg1, %c0_i32 : i32
    %1 = arith.extui %0 : i1 to i32
    %c0_i32_0 = arith.constant 0 : i32
    %2 = arith.cmpi ne, %1, %c0_i32_0 : i32
    scf.if %2 {
      %c0_16 = arith.constant 0 : index
      %c0_17 = arith.constant 0 : index
      %19 = vector.load %arg2[%c0_16, %c0_17] : memref<48x128xf32, #tpu.memory_space<vmem>>, vector<48x128xf32>
      %cst_18 = arith.constant dense<0.000000e+00> : vector<48xf32>
      %20 = vector.multi_reduction <add>, %19, %cst_18 [1] : vector<48x128xf32> to vector<48xf32>
      %21 = vector.shape_cast %20 : vector<48xf32> to vector<48x1xf32>
      %cst_19 = arith.constant 1.280000e+02 : f32
      %22 = vector.broadcast %cst_19 : f32 to vector<48x1xf32>
      %23 = arith.divf %21, %22 : vector<48x1xf32>
      %24 = vector.broadcast %23 : vector<48x1xf32> to vector<48x128xf32>
      %25 = arith.subf %19, %24 : vector<48x128xf32>
      %26 = arith.mulf %25, %25 : vector<48x128xf32>
      %cst_20 = arith.constant dense<0.000000e+00> : vector<48xf32>
      %27 = vector.multi_reduction <add>, %26, %cst_20 [1] : vector<48x128xf32> to vector<48xf32>
      %28 = vector.shape_cast %27 : vector<48xf32> to vector<48x1xf32>
      %cst_21 = arith.constant 1.280000e+02 : f32
      %29 = vector.broadcast %cst_21 : f32 to vector<48x1xf32>
      %30 = arith.divf %28, %29 : vector<48x1xf32>
      %cst_22 = arith.constant 9.99999996E-13 : f32
      %31 = vector.broadcast %cst_22 : f32 to vector<48x1xf32>
      %32 = arith.addf %30, %31 : vector<48x1xf32>
      %33 = math.rsqrt %32 : vector<48x1xf32>
      %34 = vector.broadcast %33 : vector<48x1xf32> to vector<48x128xf32>
      %35 = arith.mulf %25, %34 : vector<48x128xf32>
      %c0_23 = arith.constant 0 : index
      %c0_24 = arith.constant 0 : index
      %36 = vector.load %arg3[%c0_23, %c0_24] : memref<1x128xf32, #tpu.memory_space<vmem>>, vector<1x128xf32>
      %37 = vector.broadcast %36 : vector<1x128xf32> to vector<48x128xf32>
      %38 = arith.mulf %37, %35 : vector<48x128xf32>
      %c0_25 = arith.constant 0 : index
      %c0_26 = arith.constant 0 : index
      %39 = vector.load %arg4[%c0_25, %c0_26] : memref<1x128xf32, #tpu.memory_space<vmem>>, vector<1x128xf32>
      %40 = vector.broadcast %39 : vector<1x128xf32> to vector<48x128xf32>
      %41 = arith.addf %38, %40 : vector<48x128xf32>
      %c0_27 = arith.constant 0 : index
      %c0_28 = arith.constant 0 : index
      %42 = vector.load %arg10[%c0_27, %c0_28] : memref<48x128xf32, #tpu.memory_space<vmem>>, vector<48x128xf32>
      tpu.vector_store %arg10[%c0_27, %c0_28], %41 {strides = array<i32>} : memref<48x128xf32, #tpu.memory_space<vmem>>, vector<48x128xf32>,
      %cst_29 = arith.constant 0.000000e+00 : f32
      %43 = vector.broadcast %cst_29 : f32 to vector<48x128xf32>
      %c0_30 = arith.constant 0 : index
      %c0_31 = arith.constant 0 : index
      %44 = vector.load %arg11[%c0_30, %c0_31] : memref<48x128xf32, #tpu.memory_space<vmem>>, vector<48x128xf32>
      tpu.vector_store %arg11[%c0_30, %c0_31], %43 {strides = array<i32>} : memref<48x128xf32, #tpu.memory_space<vmem>>, vector<48x128xf32>,
    } else {
    }
    %c0 = arith.constant 0 : index
    %c0_1 = arith.constant 0 : index
    %3 = vector.load %arg10[%c0, %c0_1] : memref<48x128xf32, #tpu.memory_space<vmem>>, vector<48x128xf32>
    %c0_2 = arith.constant 0 : index
    %c0_3 = arith.constant 0 : index
    %4 = vector.load %arg5[%c0_2, %c0_3] : memref<128x512xf32, #tpu.memory_space<vmem>>, vector<128x512xf32>
    %cst = arith.constant dense<0.000000e+00> : vector<48x512xf32>
    %5 = tpu.matmul %3, %4, %cst {dimension_numbers = #tpu.dot_dimension_numbers<[1], [0], [0], [1], [0, 0, 1, 1], [], []>} : vector<48x128xf32>, vector<128x512xf32>, vector<48x512xf32> -> vector<48x512xf32>
    %c0_4 = arith.constant 0 : index
    %c0_5 = arith.constant 0 : index
    %6 = vector.load %arg6[%c0_4, %c0_5] : memref<1x512xf32, #tpu.memory_space<vmem>>, vector<1x512xf32>
    %7 = vector.broadcast %6 : vector<1x512xf32> to vector<48x512xf32>
    %8 = arith.addf %5, %7 : vector<48x512xf32>
    %cst_6 = arith.constant 0.000000e+00 : f32
    %9 = vector.broadcast %cst_6 : f32 to vector<48x512xf32>
    %10 = arith.maximumf %8, %9 : vector<48x512xf32>
    %c0_7 = arith.constant 0 : index
    %c0_8 = arith.constant 0 : index
    %11 = vector.load %arg11[%c0_7, %c0_8] : memref<48x128xf32, #tpu.memory_space<vmem>>, vector<48x128xf32>
    %c0_9 = arith.constant 0 : index
    %c0_10 = arith.constant 0 : index
    %12 = vector.load %arg7[%c0_9, %c0_10] : memref<512x128xf32, #tpu.memory_space<vmem>>, vector<512x128xf32>
    %cst_11 = arith.constant dense<0.000000e+00> : vector<48x128xf32>
    %13 = tpu.matmul %10, %12, %cst_11 {dimension_numbers = #tpu.dot_dimension_numbers<[1], [0], [0], [1], [0, 0, 1, 1], [], []>} : vector<48x512xf32>, vector<512x128xf32>, vector<48x128xf32> -> vector<48x128xf32>
    %14 = arith.addf %11, %13 : vector<48x128xf32>
    %c0_12 = arith.constant 0 : index
    %c0_13 = arith.constant 0 : index
    %15 = vector.load %arg11[%c0_12, %c0_13] : memref<48x128xf32, #tpu.memory_space<vmem>>, vector<48x128xf32>
    tpu.vector_store %arg11[%c0_12, %c0_13], %14 {strides = array<i32>} : memref<48x128xf32, #tpu.memory_space<vmem>>, vector<48x128xf32>,
    %c0_i32_14 = arith.constant 0 : i32
    %16 = arith.cmpi eq, %arg1, %c0_i32_14 : i32
    %17 = arith.extui %16 : i1 to i32
    %c0_i32_15 = arith.constant 0 : i32
    %18 = arith.cmpi ne, %17, %c0_i32_15 : i32
    scf.if %18 {
      %c0_16 = arith.constant 0 : index
      %c0_17 = arith.constant 0 : index
      %19 = vector.load %arg11[%c0_16, %c0_17] : memref<48x128xf32, #tpu.memory_space<vmem>>, vector<48x128xf32>
      %c0_18 = arith.constant 0 : index
      %c0_19 = arith.constant 0 : index
      %20 = vector.load %arg8[%c0_18, %c0_19] : memref<1x128xf32, #tpu.memory_space<vmem>>, vector<1x128xf32>
      %21 = vector.broadcast %20 : vector<1x128xf32> to vector<48x128xf32>
      %22 = arith.addf %19, %21 : vector<48x128xf32>
      %c0_20 = arith.constant 0 : index
      %c0_21 = arith.constant 0 : index
      %23 = vector.load %arg9[%c0_20, %c0_21] : memref<48x128xf32, #tpu.memory_space<vmem>>, vector<48x128xf32>
      tpu.vector_store %arg9[%c0_20, %c0_21], %22 {strides = array<i32>} : memref<48x128xf32, #tpu.memory_space<vmem>>, vector<48x128xf32>,
    } else {
    }
    return
  }
  func.func @transform_0(%arg0: i32, %arg1: i32) -> (i32, i32) {
    %c0_i32 = arith.constant 0 : i32
    %c0_i32_0 = arith.constant 0 : i32
    return %arg0, %c0_i32 : i32, i32
  }
  func.func @transform_1(%arg0: i32, %arg1: i32) -> (i32, i32) {
    %c0_i32 = arith.constant 0 : i32
    %c0_i32_0 = arith.constant 0 : i32
    %c0_i32_1 = arith.constant 0 : i32
    return %c0_i32, %c0_i32_0 : i32, i32
  }
  func.func @transform_2(%arg0: i32, %arg1: i32) -> (i32, i32) {
    %c0_i32 = arith.constant 0 : i32
    %c0_i32_0 = arith.constant 0 : i32
    %c0_i32_1 = arith.constant 0 : i32
    return %c0_i32, %c0_i32_0 : i32, i32
  }
  func.func @transform_3(%arg0: i32, %arg1: i32) -> (i32, i32) {
    %c0_i32 = arith.constant 0 : i32
    %c0_i32_0 = arith.constant 0 : i32
    return %c0_i32, %arg1 : i32, i32
  }
  func.func @transform_4(%arg0: i32, %arg1: i32) -> (i32, i32) {
    %c0_i32 = arith.constant 0 : i32
    %c0_i32_0 = arith.constant 0 : i32
    return %c0_i32, %arg1 : i32, i32
  }
  func.func @transform_5(%arg0: i32, %arg1: i32) -> (i32, i32) {
    %c0_i32 = arith.constant 0 : i32
    %c0_i32_0 = arith.constant 0 : i32
    return %arg1, %c0_i32 : i32, i32
  }
  func.func @transform_6(%arg0: i32, %arg1: i32) -> (i32, i32) {
    %c0_i32 = arith.constant 0 : i32
    %c0_i32_0 = arith.constant 0 : i32
    %c0_i32_1 = arith.constant 0 : i32
    return %c0_i32, %c0_i32_0 : i32, i32
  }
  func.func @transform_7(%arg0: i32, %arg1: i32) -> (i32, i32) {
    %c0_i32 = arith.constant 0 : i32
    %c0_i32_0 = arith.constant 0 : i32
    return %arg0, %c0_i32 : i32, i32
  }
}

</mosaic_0001>

<llo_original>
// kernel: tpu_custom_call.1
$region0: #{tpu_custom_call.1}
  #allocation0 [shape = 'u32[]', space=smem, size = 0x4, offset = 0x4, fixed_abs, tag = 'smem constant byte address 0x4 - core index']
  #allocation1 [shape = 'u32[144,128]{1,0:T(1,128)}', space=vmem, size = 0x12000, scoped, tag = 'internal scratch']
  #allocation2 [shape = 'f32[48,128]{1,0:T(8,128)}', space=vmem, size = 0x6000, scoped, tag = 'scratch operand']
  #allocation3 [shape = 'f32[48,128]{1,0:T(8,128)}', space=vmem, size = 0x6000, scoped, tag = 'scratch operand']
  %s0 = inlined_call_operand.hbm [shape: f32[48,128], index: 0, kind: input, shape index: {}]
  %s1 = inlined_call_operand.vmem [shape: f32[1,128], index: 1, kind: input, shape index: {}]
  %s2 = inlined_call_operand.vmem [shape: f32[1,128], index: 2, kind: input, shape index: {}]
  %s3 = inlined_call_operand.hbm [shape: f32[128,512], index: 3, kind: input, shape index: {}]
  %s4 = inlined_call_operand.vmem [shape: f32[1,512], index: 4, kind: input, shape index: {}]
  %s5 = inlined_call_operand.hbm [shape: f32[512,128], index: 5, kind: input, shape index: {}]
  %s6 = inlined_call_operand.vmem [shape: f32[1,128], index: 6, kind: input, shape index: {}]
  %s7 = inlined_call_operand.hbm [shape: f32[48,128], index: 7, kind: output, shape index: {}]
  %s8 = sld [smem:[#allocation0]]
  $region58: #{tpu_custom_call.1} parent=0
    _
  %s10 = ssub.s32 1, %s8
  %s11 = scalar_select 0, %s10, %s8
  $region1: #{tpu_custom_call.1} parent=0
    #allocation4 [shape = 'u8[24576]{0}', space=vmem, size = 0x6000, scoped, tag = 'input window, operand 0, single buffered']
    #allocation5 [shape = 's32[1]{0}', space=sflag, size = 0x4, scoped, tag = 'scoped memory for tpu_custom_call.1']
    #allocation6 [shape = 's32[1]{0}', space=sflag, size = 0x4, scoped, tag = 'scoped memory for tpu_custom_call.1']
    #allocation7 [shape = 'u8[262144]{0}', space=vmem, size = 0x40000, scoped, tag = 'input window, operand 3, single buffered']
    #allocation8 [shape = 's32[1]{0}', space=sflag, size = 0x4, scoped, tag = 'scoped memory for tpu_custom_call.1']
    #allocation9 [shape = 'u8[262144]{0}', space=vmem, size = 0x40000, scoped, tag = 'input window, operand 5, single buffered']
    #allocation10 [shape = 'u8[24576]{0}', space=vmem, size = 0x6000, scoped, tag = 'output window, operand 0, single buffered']
    %12 = vsyncpa [#allocation5], 0
    %13 = vsyncpa [#allocation8], 0
    %14 = vsyncpa [#allocation6], 0
    // Predicated region
    $region2: #{tpu_custom_call.1} parent=1 // pred_check
      _
    $region3: #{tpu_custom_call.1} parent=1 // pred_check_branch
      %16 = sbr.rel (0) target = $region5
    $region4: #{tpu_custom_call.1} parent=1 // pred_region
      %s18 = ssub.s32 768, 768
      %19 = vsyncadd [#allocation5], %s18
      %s20 = sshll.u32 [#allocation4], 4
      %s21 = int_to_ptr.vmem [resolvable:$true] %s20
      %26 = dma.hbm_to_vmem [thread:$0]  %s0, 768, %s21, [#allocation5], 128, 128, 8
    $region5: #{tpu_custom_call.1} parent=1 // pred_fallthru
      _
    // Predicated region
    $region6: #{tpu_custom_call.1} parent=1 // pred_check
      _
    $region7: #{tpu_custom_call.1} parent=1 // pred_check_branch
      %28 = sbr.rel (0) target = $region9
    $region8: #{tpu_custom_call.1} parent=1 // pred_region
      _
    $region9: #{tpu_custom_call.1} parent=1 // pred_fallthru
      _
    // Predicated region
    $region10: #{tpu_custom_call.1} parent=1 // pred_check
      _
    $region11: #{tpu_custom_call.1} parent=1 // pred_check_branch
      %30 = sbr.rel (0) target = $region13
    $region12: #{tpu_custom_call.1} parent=1 // pred_region
      _
    $region13: #{tpu_custom_call.1} parent=1 // pred_fallthru
      _
    // Predicated region
    $region14: #{tpu_custom_call.1} parent=1 // pred_check
      _
    $region15: #{tpu_custom_call.1} parent=1 // pred_check_branch
      %32 = sbr.rel (0) target = $region17
    $region16: #{tpu_custom_call.1} parent=1 // pred_region
      %s34 = ssub.s32 8192, 8192
      %35 = vsyncadd [#allocation8], %s34
      %s36 = sshll.u32 [#allocation7], 4
      %s37 = int_to_ptr.vmem [resolvable:$true] %s36
      %42 = dma.hbm_to_vmem [thread:$0]  %s3, 8192, %s37, [#allocation8], 512, 512, 32
    $region17: #{tpu_custom_call.1} parent=1 // pred_fallthru
      _
    // Predicated region
    $region18: #{tpu_custom_call.1} parent=1 // pred_check
      _
    $region19: #{tpu_custom_call.1} parent=1 // pred_check_branch
      %44 = sbr.rel (0) target = $region21
    $region20: #{tpu_custom_call.1} parent=1 // pred_region
      _
    $region21: #{tpu_custom_call.1} parent=1 // pred_fallthru
      _
    // Predicated region
    $region22: #{tpu_custom_call.1} parent=1 // pred_check
      _
    $region23: #{tpu_custom_call.1} parent=1 // pred_check_branch
      %46 = sbr.rel (0) target = $region25
    $region24: #{tpu_custom_call.1} parent=1 // pred_region
      %s48 = ssub.s32 8192, 8192
      %49 = vsyncadd [#allocation8], %s48
      %s50 = sshll.u32 [#allocation9], 4
      %s51 = int_to_ptr.vmem [resolvable:$true] %s50
      %56 = dma.hbm_to_vmem [thread:$0]  %s5, 8192, %s51, [#allocation8], 128, 128, 8
    $region25: #{tpu_custom_call.1} parent=1 // pred_fallthru
      _
    // Predicated region
    $region26: #{tpu_custom_call.1} parent=1 // pred_check
      _
    $region27: #{tpu_custom_call.1} parent=1 // pred_check_branch
      %58 = sbr.rel (0) target = $region29
    $region28: #{tpu_custom_call.1} parent=1 // pred_region
      _
    $region29: #{tpu_custom_call.1} parent=1 // pred_fallthru
      _
    // Predicated region
    $region30: #{tpu_custom_call.1} parent=1 // pred_check
      _
    $region31: #{tpu_custom_call.1} parent=1 // pred_check_branch
      %60 = sbr.rel (0) target = $region33
    $region32: #{tpu_custom_call.1} parent=1 // pred_region
      %61 = dma.done [#allocation5], 768
    $region33: #{tpu_custom_call.1} parent=1 // pred_fallthru
      _
    // Predicated region
    $region34: #{tpu_custom_call.1} parent=1 // pred_check
      _
    $region35: #{tpu_custom_call.1} parent=1 // pred_check_branch
      %63 = sbr.rel (0) target = $region37
    $region36: #{tpu_custom_call.1} parent=1 // pred_region
      %64 = dma.done [#allocation8], 8192
    $region37: #{tpu_custom_call.1} parent=1 // pred_fallthru
      _
    // Predicated region
    $region38: #{tpu_custom_call.1} parent=1 // pred_check
      _
    $region39: #{tpu_custom_call.1} parent=1 // pred_check_branch
      %66 = sbr.rel (0) target = $region41
    $region40: #{tpu_custom_call.1} parent=1 // pred_region
      %67 = dma.done [#allocation8], 8192
    $region41: #{tpu_custom_call.1} parent=1 // pred_fallthru
      _
    %p68 = scmp.eq.s32.totalorder 0, 0
    // Predicated region
    $region42: #{tpu_custom_call.1} parent=1 // pred_check
      %p69 = pneg %p68
    $region43: #{tpu_custom_call.1} parent=1 // pred_check_branch
      %71 = sbr.rel (%p69) target = $region45
    $region44: #{tpu_custom_call.1} parent=1 // pred_region
      %v72 = vld [vmem:[#allocation4] sm:$0xff]
      %v73 = vld [vmem:[#allocation4 + $0x8] sm:$0xff]
      %v74 = vld [vmem:[#allocation4 + $0x10] sm:$0xff]
      %v75 = vld [vmem:[#allocation4 + $0x18] sm:$0xff]
      %v76 = vld [vmem:[#allocation4 + $0x20] sm:$0xff]
      %v77 = vld [vmem:[#allocation4 + $0x28] sm:$0xff]
      %78 = vadd.xlane.f32.xlu0 %v72
      %v79 = vpop.xlane.xlu0 %78
      %80 = vadd.xlane.f32.xlu0 %v73
      %v81 = vpop.xlane.xlu0 %80
      %82 = vadd.xlane.f32.xlu0 %v74
      %v83 = vpop.xlane.xlu0 %82
      %84 = vadd.xlane.f32.xlu0 %v75
      %v85 = vpop.xlane.xlu0 %84
      %86 = vadd.xlane.f32.xlu0 %v76
      %v87 = vpop.xlane.xlu0 %86
      %88 = vadd.xlane.f32.xlu0 %v77
      %v89 = vpop.xlane.xlu0 %88
      %v90 = vrcp.pop 128.0
      %v91 = vmul.f32 %v79, %v90
      %v92 = vmul.f32 %v81, %v90
      %v93 = vmul.f32 %v83, %v90
      %v94 = vmul.f32 %v85, %v90
      %v95 = vmul.f32 %v87, %v90
      %v96 = vmul.f32 %v89, %v90
      %v97 = vsub.f32 %v72, %v91
      %v98 = vsub.f32 %v73, %v92
      %v99 = vsub.f32 %v74, %v93
      %v100 = vsub.f32 %v75, %v94
      %v101 = vsub.f32 %v76, %v95
      %v102 = vsub.f32 %v77, %v96
      %v103 = vmul.f32 %v97, %v97
      %v104 = vmul.f32 %v98, %v98
      %v105 = vmul.f32 %v99, %v99
      %v106 = vmul.f32 %v100, %v100
      %v107 = vmul.f32 %v101, %v101
      %v108 = vmul.f32 %v102, %v102
      %109 = vadd.xlane.f32.xlu0 %v103
      %v110 = vpop.xlane.xlu0 %109
      %111 = vadd.xlane.f32.xlu0 %v104
      %v112 = vpop.xlane.xlu0 %111
      %113 = vadd.xlane.f32.xlu0 %v105
      %v114 = vpop.xlane.xlu0 %113
      %115 = vadd.xlane.f32.xlu0 %v106
      %v116 = vpop.xlane.xlu0 %115
      %117 = vadd.xlane.f32.xlu0 %v107
      %v118 = vpop.xlane.xlu0 %117
      %119 = vadd.xlane.f32.xlu0 %v108
      %v120 = vpop.xlane.xlu0 %119
      %v121 = vmul.f32 %v110, %v90
      %v122 = vmul.f32 %v112, %v90
      %v123 = vmul.f32 %v114, %v90
      %v124 = vmul.f32 %v116, %v90
      %v125 = vmul.f32 %v118, %v90
      %v126 = vmul.f32 %v120, %v90
      %v127 = vadd.f32 %v121, 1e-12
      %v128 = vadd.f32 %v122, 1e-12
      %v129 = vadd.f32 %v123, 1e-12
      %v130 = vadd.f32 %v124, 1e-12
      %v131 = vadd.f32 %v125, 1e-12
      %v132 = vadd.f32 %v126, 1e-12
      %v133 = vrsqrt.pop %v127
      %v134 = vrsqrt.pop %v128
      %v135 = vrsqrt.pop %v129
      %v136 = vrsqrt.pop %v130
      %v137 = vrsqrt.pop %v131
      %v138 = vrsqrt.pop %v132
      %v139 = vmul.f32 %v97, %v133
      %v140 = vmul.f32 %v98, %v134
      %v141 = vmul.f32 %v99, %v135
      %v142 = vmul.f32 %v100, %v136
      %v143 = vmul.f32 %v101, %v137
      %v144 = vmul.f32 %v102, %v138
      %v145 = vld [vmem:[%s1] sm:$0x1]
      %v147 = vlaneseq
      %v148 = vshrl.u32 %v147, 7
      %v149 = vsub.s32 0, %v148
      %v150 = vrot.slane %v145, %v149
      %v152 = vmul.f32 %v150, %v139
      %v153 = vmul.f32 %v150, %v140
      %v154 = vmul.f32 %v150, %v141
      %v155 = vmul.f32 %v150, %v142
      %v156 = vmul.f32 %v150, %v143
      %v157 = vmul.f32 %v150, %v144
      %v158 = vld [vmem:[%s2] sm:$0x1]
      %v160 = vlaneseq
      %v161 = vshrl.u32 %v160, 7
      %v162 = vsub.s32 0, %v161
      %v163 = vrot.slane %v158, %v162
      %v165 = vadd.f32 %v152, %v163
      %v166 = vadd.f32 %v153, %v163
      %v167 = vadd.f32 %v154, %v163
      %v168 = vadd.f32 %v155, %v163
      %v169 = vadd.f32 %v156, %v163
      %v170 = vadd.f32 %v157, %v163
      %171 = vst [vmem:[#allocation2] sm:$0xff] %v165
      %172 = vst [vmem:[#allocation2 + $0x8] sm:$0xff] %v166
      %173 = vst [vmem:[#allocation2 + $0x10] sm:$0xff] %v167
      %174 = vst [vmem:[#allocation2 + $0x18] sm:$0xff] %v168
      %175 = vst [vmem:[#allocation2 + $0x20] sm:$0xff] %v169
      %176 = vst [vmem:[#allocation2 + $0x28] sm:$0xff] %v170
      %177 = vst [vmem:[#allocation3] sm:$0xff] 0.0
      %178 = vst [vmem:[#allocation3 + $0x8] sm:$0xff] 0.0
      %179 = vst [vmem:[#allocation3 + $0x10] sm:$0xff] 0.0
      %180 = vst [vmem:[#allocation3 + $0x18] sm:$0xff] 0.0
      %181 = vst [vmem:[#allocation3 + $0x20] sm:$0xff] 0.0
      %182 = vst [vmem:[#allocation3 + $0x28] sm:$0xff] 0.0
    $region45: #{tpu_custom_call.1} parent=1 // pred_fallthru
      _
    %v183 = vld [vmem:[#allocation2] sm:$0xff]
    %v184 = vld [vmem:[#allocation2 + $0x8] sm:$0xff]
    %v185 = vld [vmem:[#allocation2 + $0x10] sm:$0xff]
    %v186 = vld [vmem:[#allocation2 + $0x18] sm:$0xff]
    %v187 = vld [vmem:[#allocation2 + $0x20] sm:$0xff]
    %v188 = vld [vmem:[#allocation2 + $0x28] sm:$0xff]
    %v189 = vld [vmem:[#allocation7] sm:$0xff]
    %v190 = vld [vmem:[#allocation7 + $0x8] sm:$0xff]
    %v191 = vld [vmem:[#allocation7 + $0x10] sm:$0xff]
    %v192 = vld [vmem:[#allocation7 + $0x18] sm:$0xff]
    %v193 = vld [vmem:[#allocation7 + $0x20] sm:$0xff]
    %v194 = vld [vmem:[#allocation7 + $0x28] sm:$0xff]
    %v195 = vld [vmem:[#allocation7 + $0x30] sm:$0xff]
    %v196 = vld [vmem:[#allocation7 + $0x38] sm:$0xff]
    %v197 = vld [vmem:[#allocation7 + $0x40] sm:$0xff]
    %v198 = vld [vmem:[#allocation7 + $0x48] sm:$0xff]
    %v199 = vld [vmem:[#allocation7 + $0x50] sm:$0xff]
    %v200 = vld [vmem:[#allocation7 + $0x58] sm:$0xff]
    %v201 = vld [vmem:[#allocation7 + $0x60] sm:$0xff]
    %v202 = vld [vmem:[#allocation7 + $0x68] sm:$0xff]
    %v203 = vld [vmem:[#allocation7 + $0x70] sm:$0xff]
    %v204 = vld [vmem:[#allocation7 + $0x78] sm:$0xff]
    %v205 = vld [vmem:[#allocation7 + $0x80] sm:$0xff]
    %v206 = vld [vmem:[#allocation7 + $0x88] sm:$0xff]
    %v207 = vld [vmem:[#allocation7 + $0x90] sm:$0xff]
    %v208 = vld [vmem:[#allocation7 + $0x98] sm:$0xff]
    %v209 = vld [vmem:[#allocation7 + $0xa0] sm:$0xff]
    %v210 = vld [vmem:[#allocation7 + $0xa8] sm:$0xff]
    %v211 = vld [vmem:[#allocation7 + $0xb0] sm:$0xff]
    %v212 = vld [vmem:[#allocation7 + $0xb8] sm:$0xff]
    %v213 = vld [vmem:[#allocation7 + $0xc0] sm:$0xff]
    %v214 = vld [vmem:[#allocation7 + $0xc8] sm:$0xff]
    %v215 = vld [vmem:[#allocation7 + $0xd0] sm:$0xff]
    %v216 = vld [vmem:[#allocation7 + $0xd8] sm:$0xff]
    %v217 = vld [vmem:[#allocation7 + $0xe0] sm:$0xff]
    %v218 = vld [vmem:[#allocation7 + $0xe8] sm:$0xff]
    %v219 = vld [vmem:[#allocation7 + $0xf0] sm:$0xff]
    %v220 = vld [vmem:[#allocation7 + $0xf8] sm:$0xff]
    %v221 = vld [vmem:[#allocation7 + $0x100] sm:$0xff]
    %v222 = vld [vmem:[#allocation7 + $0x108] sm:$0xff]
    %v223 = vld [vmem:[#allocation7 + $0x110] sm:$0xff]
    %v224 = vld [vmem:[#allocation7 + $0x118] sm:$0xff]
    %v225 = vld [vmem:[#allocation7 + $0x120] sm:$0xff]
    %v226 = vld [vmem:[#allocation7 + $0x128] sm:$0xff]
    %v227 = vld [vmem:[#allocation7 + $0x130] sm:$0xff]
    %v228 = vld [vmem:[#allocation7 + $0x138] sm:$0xff]
    %v229 = vld [vmem:[#allocation7 + $0x140] sm:$0xff]
    %v230 = vld [vmem:[#allocation7 + $0x148] sm:$0xff]
    %v231 = vld [vmem:[#allocation7 + $0x150] sm:$0xff]
    %v232 = vld [vmem:[#allocation7 + $0x158] sm:$0xff]
    %v233 = vld [vmem:[#allocation7 + $0x160] sm:$0xff]
    %v234 = vld [vmem:[#allocation7 + $0x168] sm:$0xff]
    %v235 = vld [vmem:[#allocation7 + $0x170] sm:$0xff]
    %v236 = vld [vmem:[#allocation7 + $0x178] sm:$0xff]
    %v237 = vld [vmem:[#allocation7 + $0x180] sm:$0xff]
    %v238 = vld [vmem:[#allocation7 + $0x188] sm:$0xff]
    %v239 = vld [vmem:[#allocation7 + $0x190] sm:$0xff]
    %v240 = vld [vmem:[#allocation7 + $0x198] sm:$0xff]
    %v241 = vld [vmem:[#allocation7 + $0x1a0] sm:$0xff]
    %v242 = vld [vmem:[#allocation7 + $0x1a8] sm:$0xff]
    %v243 = vld [vmem:[#allocation7 + $0x1b0] sm:$0xff]
    %v244 = vld [vmem:[#allocation7 + $0x1b8] sm:$0xff]
    %v245 = vld [vmem:[#allocation7 + $0x1c0] sm:$0xff]
    %v246 = vld [vmem:[#allocation7 + $0x1c8] sm:$0xff]
    %v247 = vld [vmem:[#allocation7 + $0x1d0] sm:$0xff]
    %v248 = vld [vmem:[#allocation7 + $0x1d8] sm:$0xff]
    %v249 = vld [vmem:[#allocation7 + $0x1e0] sm:$0xff]
    %v250 = vld [vmem:[#allocation7 + $0x1e8] sm:$0xff]
    %v251 = vld [vmem:[#allocation7 + $0x1f0] sm:$0xff]
    %v252 = vld [vmem:[#allocation7 + $0x1f8] sm:$0xff]
    %v253 = vld [vmem:[%s4] sm:$0xf]
    %v255 = vlaneseq
    %v256 = vshrl.u32 %v255, 7
    %v257 = vsub.s32 0, %v256
    %v258 = vrot.slane %v253, %v257
    %v259 = vlaneseq
    %v260 = vshrl.u32 %v259, 7
    %v261 = vsub.s32 1, %v260
    %v262 = vrot.slane %v253, %v261
    %v263 = vlaneseq
    %v264 = vshrl.u32 %v263, 7
    %v265 = vsub.s32 2, %v264
    %v266 = vrot.slane %v253, %v265
    %v267 = vlaneseq
    %v268 = vshrl.u32 %v267, 7
    %v269 = vsub.s32 3, %v268
    %v270 = vrot.slane %v253, %v269
    %275 = vmatprep.subr.mxu0 %v250
    %276 = vmatpush1.msra.mxu0 %v249
    %277 = vmatprep.subr.mxu0 %v246
    %278 = vmatpush1.msra.mxu0 %v245
    %279 = vmatprep.subr.mxu0 %v242
    %280 = vmatpush1.msra.mxu0 %v241
    %281 = vmatprep.subr.mxu0 %v238
    %282 = vmatpush1.msra.mxu0 %v237
    %283 = vmatprep.subr.mxu0 %v234
    %284 = vmatpush1.msra.mxu0 %v233
    %285 = vmatprep.subr.mxu0 %v230
    %286 = vmatpush1.msra.mxu0 %v229
    %287 = vmatprep.subr.mxu0 %v226
    %288 = vmatpush1.msra.mxu0 %v225
    %289 = vmatprep.subr.mxu0 %v222
    %290 = vmatpush1.msra.mxu0 %v221
    %291 = vmatprep.subr.mxu0 %v218
    %292 = vmatpush1.msra.mxu0 %v217
    %293 = vmatprep.subr.mxu0 %v214
    %294 = vmatpush1.msra.mxu0 %v213
    %295 = vmatprep.subr.mxu0 %v210
    %296 = vmatpush1.msra.mxu0 %v209
    %297 = vmatprep.subr.mxu0 %v206
    %298 = vmatpush1.msra.mxu0 %v205
    %299 = vmatprep.subr.mxu0 %v202
    %300 = vmatpush1.msra.mxu0 %v201
    %301 = vmatprep.subr.mxu0 %v198
    %302 = vmatpush1.msra.mxu0 %v197
    %303 = vmatprep.subr.mxu0 %v194
    %304 = vmatpush1.msra.mxu0 %v193
    %305 = vmatprep.subr.mxu0 %v190
    %306 = vmatpush1.msra.mxu0 %v189
    %307 = vmatprep.subr.mxu0 0.0
    %308 = vmatpush2.msra.mxu0 0.0
    %309 = vmatprep.subr.mxu0 0.0
    %310 = vmatpush2.msra.mxu0 0.0
    %311 = vmatprep.subr.mxu0 0.0
    %312 = vmatpush2.msra.mxu0 0.0
    %313 = vmatprep.subr.mxu0 0.0
    %314 = vmatpush2.msra.mxu0 0.0
    %315 = vmatprep.subr.mxu0 0.0
    %316 = vmatpush2.msra.mxu0 0.0
    %317 = vmatprep.subr.mxu0 0.0
    %318 = vmatpush2.msra.mxu0 0.0
    %319 = vmatprep.subr.mxu0 0.0
    %320 = vmatpush2.msra.mxu0 0.0
    %321 = vmatprep.subr.mxu0 0.0
    %322 = vmatpush2.msra.mxu0 0.0
    %323 = vmatprep.subr.mxu0 0.0
    %324 = vmatpush2.msra.mxu0 0.0
    %325 = vmatprep.subr.mxu0 0.0
    %326 = vmatpush2.msra.mxu0 0.0
    %327 = vmatprep.subr.mxu0 0.0
    %328 = vmatpush2.msra.mxu0 0.0
    %329 = vmatprep.subr.mxu0 0.0
    %330 = vmatpush2.msra.mxu0 0.0
    %331 = vmatprep.subr.mxu0 0.0
    %332 = vmatpush2.msra.mxu0 0.0
    %333 = vmatprep.subr.mxu0 0.0
    %334 = vmatpush2.msra.mxu0 0.0
    %335 = vmatprep.subr.mxu0 0.0
    %336 = vmatpush2.msra.mxu0 0.0
    %337 = vmatprep.subr.mxu0 0.0
    %338 = vmatpush2.msra.mxu0 0.0
    %339 = vmatprep.mubr.f32.mxu0 0.0
    %340 = vmatmul.mubr.f32.gmra.mxu0 %v183
    %v341 = vpop.f32.mrf.mxu0
    %v342 = vadd.f32 %v258, %v341
    %v343 = vpop.f32.mrf.mxu0
    %v344 = vadd.f32 %v262, %v343
    %345 = vmatprep.mubr.f32.mxu0 0.0
    %346 = vmatmul.mubr.f32.gmra.mxu0 %v184
    %v347 = vpop.f32.mrf.mxu0
    %v348 = vadd.f32 %v258, %v347
    %v349 = vpop.f32.mrf.mxu0
    %v350 = vadd.f32 %v262, %v349
    %351 = vmatprep.mubr.f32.mxu0 0.0
    %352 = vmatmul.mubr.f32.gmra.mxu0 %v185
    %v353 = vpop.f32.mrf.mxu0
    %v354 = vadd.f32 %v258, %v353
    %v355 = vpop.f32.mrf.mxu0
    %v356 = vadd.f32 %v262, %v355
    %357 = vmatprep.mubr.f32.mxu0 0.0
    %358 = vmatmul.mubr.f32.gmra.mxu0 %v186
    %v359 = vpop.f32.mrf.mxu0
    %v360 = vadd.f32 %v258, %v359
    %v361 = vpop.f32.mrf.mxu0
    %v362 = vadd.f32 %v262, %v361
    %363 = vmatprep.mubr.f32.mxu0 0.0
    %364 = vmatmul.mubr.f32.gmra.mxu0 %v187
    %v365 = vpop.f32.mrf.mxu0
    %v366 = vadd.f32 %v258, %v365
    %v367 = vpop.f32.mrf.mxu0
    %v368 = vadd.f32 %v262, %v367
    %369 = vmatprep.mubr.f32.mxu0 0.0
    %370 = vmatmul.mubr.f32.gmra.mxu0 %v188
    %v371 = vpop.f32.mrf.mxu0
    %v372 = vadd.f32 %v258, %v371
    %v373 = vpop.f32.mrf.mxu0
    %v374 = vadd.f32 %v262, %v373
    %375 = vdwg.mxu0
    %376 = vmatprep.subr.mxu0 %v252
    %377 = vmatpush1.msra.mxu0 %v251
    %378 = vmatprep.subr.mxu0 %v248
    %379 = vmatpush1.msra.mxu0 %v247
    %380 = vmatprep.subr.mxu0 %v244
    %381 = vmatpush1.msra.mxu0 %v243
    %382 = vmatprep.subr.mxu0 %v240
    %383 = vmatpush1.msra.mxu0 %v239
    %384 = vmatprep.subr.mxu0 %v236
    %385 = vmatpush1.msra.mxu0 %v235
    %386 = vmatprep.subr.mxu0 %v232
    %387 = vmatpush1.msra.mxu0 %v231
    %388 = vmatprep.subr.mxu0 %v228
    %389 = vmatpush1.msra.mxu0 %v227
    %390 = vmatprep.subr.mxu0 %v224
    %391 = vmatpush1.msra.mxu0 %v223
    %392 = vmatprep.subr.mxu0 %v220
    %393 = vmatpush1.msra.mxu0 %v219
    %394 = vmatprep.subr.mxu0 %v216
    %395 = vmatpush1.msra.mxu0 %v215
    %396 = vmatprep.subr.mxu0 %v212
    %397 = vmatpush1.msra.mxu0 %v211
    %398 = vmatprep.subr.mxu0 %v208
    %399 = vmatpush1.msra.mxu0 %v207
    %400 = vmatprep.subr.mxu0 %v204
    %401 = vmatpush1.msra.mxu0 %v203
    %402 = vmatprep.subr.mxu0 %v200
    %403 = vmatpush1.msra.mxu0 %v199
    %404 = vmatprep.subr.mxu0 %v196
    %405 = vmatpush1.msra.mxu0 %v195
    %406 = vmatprep.subr.mxu0 %v192
    %407 = vmatpush1.msra.mxu0 %v191
    %408 = vmatprep.subr.mxu0 0.0
    %409 = vmatpush2.msra.mxu0 0.0
    %410 = vmatprep.subr.mxu0 0.0
    %411 = vmatpush2.msra.mxu0 0.0
    %412 = vmatprep.subr.mxu0 0.0
    %413 = vmatpush2.msra.mxu0 0.0
    %414 = vmatprep.subr.mxu0 0.0
    %415 = vmatpush2.msra.mxu0 0.0
    %416 = vmatprep.subr.mxu0 0.0
    %417 = vmatpush2.msra.mxu0 0.0
    %418 = vmatprep.subr.mxu0 0.0
    %419 = vmatpush2.msra.mxu0 0.0
    %420 = vmatprep.subr.mxu0 0.0
    %421 = vmatpush2.msra.mxu0 0.0
    %422 = vmatprep.subr.mxu0 0.0
    %423 = vmatpush2.msra.mxu0 0.0
    %424 = vmatprep.subr.mxu0 0.0
    %425 = vmatpush2.msra.mxu0 0.0
    %426 = vmatprep.subr.mxu0 0.0
    %427 = vmatpush2.msra.mxu0 0.0
    %428 = vmatprep.subr.mxu0 0.0
    %429 = vmatpush2.msra.mxu0 0.0
    %430 = vmatprep.subr.mxu0 0.0
    %431 = vmatpush2.msra.mxu0 0.0
    %432 = vmatprep.subr.mxu0 0.0
    %433 = vmatpush2.msra.mxu0 0.0
    %434 = vmatprep.subr.mxu0 0.0
    %435 = vmatpush2.msra.mxu0 0.0
    %436 = vmatprep.subr.mxu0 0.0
    %437 = vmatpush2.msra.mxu0 0.0
    %438 = vmatprep.subr.mxu0 0.0
    %439 = vmatpush2.msra.mxu0 0.0
    %440 = vmatprep.mubr.f32.mxu0 0.0
    %441 = vmatmul.mubr.f32.gmra.mxu0 %v183
    %v442 = vpop.f32.mrf.mxu0
    %v443 = vadd.f32 %v266, %v442
    %v444 = vpop.f32.mrf.mxu0
    %v445 = vadd.f32 %v270, %v444
    %446 = vmatprep.mubr.f32.mxu0 0.0
    %447 = vmatmul.mubr.f32.gmra.mxu0 %v184
    %v448 = vpop.f32.mrf.mxu0
    %v449 = vadd.f32 %v266, %v448
    %v450 = vpop.f32.mrf.mxu0
    %v451 = vadd.f32 %v270, %v450
    %452 = vmatprep.mubr.f32.mxu0 0.0
    %453 = vmatmul.mubr.f32.gmra.mxu0 %v185
    %v454 = vpop.f32.mrf.mxu0
    %v455 = vadd.f32 %v266, %v454
    %v456 = vpop.f32.mrf.mxu0
    %v457 = vadd.f32 %v270, %v456
    %458 = vmatprep.mubr.f32.mxu0 0.0
    %459 = vmatmul.mubr.f32.gmra.mxu0 %v186
    %v460 = vpop.f32.mrf.mxu0
    %v461 = vadd.f32 %v266, %v460
    %v462 = vpop.f32.mrf.mxu0
    %v463 = vadd.f32 %v270, %v462
    %464 = vmatprep.mubr.f32.mxu0 0.0
    %465 = vmatmul.mubr.f32.gmra.mxu0 %v187
    %v466 = vpop.f32.mrf.mxu0
    %v467 = vadd.f32 %v266, %v466
    %v468 = vpop.f32.mrf.mxu0
    %v469 = vadd.f32 %v270, %v468
    %470 = vmatprep.mubr.f32.mxu0 0.0
    %471 = vmatmul.mubr.f32.gmra.mxu0 %v188
    %v472 = vpop.f32.mrf.mxu0
    %v473 = vadd.f32 %v266, %v472
    %v474 = vpop.f32.mrf.mxu0
    %v475 = vadd.f32 %v270, %v474
    %476 = vdwg.mxu0
    %v477 = vmax.f32 %v342, 0.0
    %v478 = vmax.f32 %v344, 0.0
    %v479 = vmax.f32 %v443, 0.0
    %v480 = vmax.f32 %v445, 0.0
    %v481 = vmax.f32 %v348, 0.0
    %v482 = vmax.f32 %v350, 0.0
    %v483 = vmax.f32 %v449, 0.0
    %v484 = vmax.f32 %v451, 0.0
    %v485 = vmax.f32 %v354, 0.0
    %v486 = vmax.f32 %v356, 0.0
    %v487 = vmax.f32 %v455, 0.0
    %v488 = vmax.f32 %v457, 0.0
    %v489 = vmax.f32 %v360, 0.0
    %v490 = vmax.f32 %v362, 0.0
    %v491 = vmax.f32 %v461, 0.0
    %v492 = vmax.f32 %v463, 0.0
    %v493 = vmax.f32 %v366, 0.0
    %v494 = vmax.f32 %v368, 0.0
    %v495 = vmax.f32 %v467, 0.0
    %v496 = vmax.f32 %v469, 0.0
    %v497 = vmax.f32 %v372, 0.0
    %v498 = vmax.f32 %v374, 0.0
    %v499 = vmax.f32 %v473, 0.0
    %v500 = vmax.f32 %v475, 0.0
    %v501 = vld [vmem:[#allocation3] sm:$0xff]
    %v502 = vld [vmem:[#allocation3 + $0x8] sm:$0xff]
    %v503 = vld [vmem:[#allocation3 + $0x10] sm:$0xff]
    %v504 = vld [vmem:[#allocation3 + $0x18] sm:$0xff]
    %v505 = vld [vmem:[#allocation3 + $0x20] sm:$0xff]
    %v506 = vld [vmem:[#allocation3 + $0x28] sm:$0xff]
    %v507 = vld [vmem:[#allocation9] sm:$0xff]
    %v508 = vld [vmem:[#allocation9 + $0x8] sm:$0xff]
    %v509 = vld [vmem:[#allocation9 + $0x10] sm:$0xff]
    %v510 = vld [vmem:[#allocation9 + $0x18] sm:$0xff]
    %v511 = vld [vmem:[#allocation9 + $0x20] sm:$0xff]
    %v512 = vld [vmem:[#allocation9 + $0x28] sm:$0xff]
    %v513 = vld [vmem:[#allocation9 + $0x30] sm:$0xff]
    %v514 = vld [vmem:[#allocation9 + $0x38] sm:$0xff]
    %v515 = vld [vmem:[#allocation9 + $0x40] sm:$0xff]
    %v516 = vld [vmem:[#allocation9 + $0x48] sm:$0xff]
    %v517 = vld [vmem:[#allocation9 + $0x50] sm:$0xff]
    %v518 = vld [vmem:[#allocation9 + $0x58] sm:$0xff]
    %v519 = vld [vmem:[#allocation9 + $0x60] sm:$0xff]
    %v520 = vld [vmem:[#allocation9 + $0x68] sm:$0xff]
    %v521 = vld [vmem:[#allocation9 + $0x70] sm:$0xff]
    %v522 = vld [vmem:[#allocation9 + $0x78] sm:$0xff]
    %v523 = vld [vmem:[#allocation9 + $0x80] sm:$0xff]
    %v524 = vld [vmem:[#allocation9 + $0x88] sm:$0xff]
    %v525 = vld [vmem:[#allocation9 + $0x90] sm:$0xff]
    %v526 = vld [vmem:[#allocation9 + $0x98] sm:$0xff]
    %v527 = vld [vmem:[#allocation9 + $0xa0] sm:$0xff]
    %v528 = vld [vmem:[#allocation9 + $0xa8] sm:$0xff]
    %v529 = vld [vmem:[#allocation9 + $0xb0] sm:$0xff]
    %v530 = vld [vmem:[#allocation9 + $0xb8] sm:$0xff]
    %v531 = vld [vmem:[#allocation9 + $0xc0] sm:$0xff]
    %v532 = vld [vmem:[#allocation9 + $0xc8] sm:$0xff]
    %v533 = vld [vmem:[#allocation9 + $0xd0] sm:$0xff]
    %v534 = vld [vmem:[#allocation9 + $0xd8] sm:$0xff]
    %v535 = vld [vmem:[#allocation9 + $0xe0] sm:$0xff]
    %v536 = vld [vmem:[#allocation9 + $0xe8] sm:$0xff]
    %v537 = vld [vmem:[#allocation9 + $0xf0] sm:$0xff]
    %v538 = vld [vmem:[#allocation9 + $0xf8] sm:$0xff]
    %v539 = vld [vmem:[#allocation9 + $0x100] sm:$0xff]
    %v540 = vld [vmem:[#allocation9 + $0x108] sm:$0xff]
    %v541 = vld [vmem:[#allocation9 + $0x110] sm:$0xff]
    %v542 = vld [vmem:[#allocation9 + $0x118] sm:$0xff]
    %v543 = vld [vmem:[#allocation9 + $0x120] sm:$0xff]
    %v544 = vld [vmem:[#allocation9 + $0x128] sm:$0xff]
    %v545 = vld [vmem:[#allocation9 + $0x130] sm:$0xff]
    %v546 = vld [vmem:[#allocation9 + $0x138] sm:$0xff]
    %v547 = vld [vmem:[#allocation9 + $0x140] sm:$0xff]
    %v548 = vld [vmem:[#allocation9 + $0x148] sm:$0xff]
    %v549 = vld [vmem:[#allocation9 + $0x150] sm:$0xff]
    %v550 = vld [vmem:[#allocation9 + $0x158] sm:$0xff]
    %v551 = vld [vmem:[#allocation9 + $0x160] sm:$0xff]
    %v552 = vld [vmem:[#allocation9 + $0x168] sm:$0xff]
    %v553 = vld [vmem:[#allocation9 + $0x170] sm:$0xff]
    %v554 = vld [vmem:[#allocation9 + $0x178] sm:$0xff]
    %v555 = vld [vmem:[#allocation9 + $0x180] sm:$0xff]
    %v556 = vld [vmem:[#allocation9 + $0x188] sm:$0xff]
    %v557 = vld [vmem:[#allocation9 + $0x190] sm:$0xff]
    %v558 = vld [vmem:[#allocation9 + $0x198] sm:$0xff]
    %v559 = vld [vmem:[#allocation9 + $0x1a0] sm:$0xff]
    %v560 = vld [vmem:[#allocation9 + $0x1a8] sm:$0xff]
    %v561 = vld [vmem:[#allocation9 + $0x1b0] sm:$0xff]
    %v562 = vld [vmem:[#allocation9 + $0x1b8] sm:$0xff]
    %v563 = vld [vmem:[#allocation9 + $0x1c0] sm:$0xff]
    %v564 = vld [vmem:[#allocation9 + $0x1c8] sm:$0xff]
    %v565 = vld [vmem:[#allocation9 + $0x1d0] sm:$0xff]
    %v566 = vld [vmem:[#allocation9 + $0x1d8] sm:$0xff]
    %v567 = vld [vmem:[#allocation9 + $0x1e0] sm:$0xff]
    %v568 = vld [vmem:[#allocation9 + $0x1e8] sm:$0xff]
    %v569 = vld [vmem:[#allocation9 + $0x1f0] sm:$0xff]
    %v570 = vld [vmem:[#allocation9 + $0x1f8] sm:$0xff]
    %571 = vmatprep.subr.mxu0 0.0
    %572 = vmatpush1.msra.mxu0 %v522
    %573 = vmatprep.subr.mxu0 0.0
    %574 = vmatpush1.msra.mxu0 %v521
    %575 = vmatprep.subr.mxu0 0.0
    %576 = vmatpush1.msra.mxu0 %v520
    %577 = vmatprep.subr.mxu0 0.0
    %578 = vmatpush1.msra.mxu0 %v519
    %579 = vmatprep.subr.mxu0 0.0
    %580 = vmatpush1.msra.mxu0 %v518
    %581 = vmatprep.subr.mxu0 0.0
    %582 = vmatpush1.msra.mxu0 %v517
    %583 = vmatprep.subr.mxu0 0.0
    %584 = vmatpush1.msra.mxu0 %v516
    %585 = vmatprep.subr.mxu0 0.0
    %586 = vmatpush1.msra.mxu0 %v515
    %587 = vmatprep.subr.mxu0 0.0
    %588 = vmatpush1.msra.mxu0 %v514
    %589 = vmatprep.subr.mxu0 0.0
    %590 = vmatpush1.msra.mxu0 %v513
    %591 = vmatprep.subr.mxu0 0.0
    %592 = vmatpush1.msra.mxu0 %v512
    %593 = vmatprep.subr.mxu0 0.0
    %594 = vmatpush1.msra.mxu0 %v511
    %595 = vmatprep.subr.mxu0 0.0
    %596 = vmatpush1.msra.mxu0 %v510
    %597 = vmatprep.subr.mxu0 0.0
    %598 = vmatpush1.msra.mxu0 %v509
    %599 = vmatprep.subr.mxu0 0.0
    %600 = vmatpush1.msra.mxu0 %v508
    %601 = vmatprep.subr.mxu0 0.0
    %602 = vmatpush1.msra.mxu0 %v507
    %603 = vmatprep.subr.mxu0 0.0
    %604 = vmatpush2.msra.mxu0 %v538
    %605 = vmatprep.subr.mxu0 0.0
    %606 = vmatpush2.msra.mxu0 %v537
    %607 = vmatprep.subr.mxu0 0.0
    %608 = vmatpush2.msra.mxu0 %v536
    %609 = vmatprep.subr.mxu0 0.0
    %610 = vmatpush2.msra.mxu0 %v535
    %611 = vmatprep.subr.mxu0 0.0
    %612 = vmatpush2.msra.mxu0 %v534
    %613 = vmatprep.subr.mxu0 0.0
    %614 = vmatpush2.msra.mxu0 %v533
    %615 = vmatprep.subr.mxu0 0.0
    %616 = vmatpush2.msra.mxu0 %v532
    %617 = vmatprep.subr.mxu0 0.0
    %618 = vmatpush2.msra.mxu0 %v531
    %619 = vmatprep.subr.mxu0 0.0
    %620 = vmatpush2.msra.mxu0 %v530
    %621 = vmatprep.subr.mxu0 0.0
    %622 = vmatpush2.msra.mxu0 %v529
    %623 = vmatprep.subr.mxu0 0.0
    %624 = vmatpush2.msra.mxu0 %v528
    %625 = vmatprep.subr.mxu0 0.0
    %626 = vmatpush2.msra.mxu0 %v527
    %627 = vmatprep.subr.mxu0 0.0
    %628 = vmatpush2.msra.mxu0 %v526
    %629 = vmatprep.subr.mxu0 0.0
    %630 = vmatpush2.msra.mxu0 %v525
    %631 = vmatprep.subr.mxu0 0.0
    %632 = vmatpush2.msra.mxu0 %v524
    %633 = vmatprep.subr.mxu0 0.0
    %634 = vmatpush2.msra.mxu0 %v523
    %635 = vmatprep.mubr.f32.mxu0 %v478
    %636 = vmatmul.mubr.f32.gmra.mxu0 %v477
    %v637 = vpop.f32.mrf.mxu0
    %v638 = vadd.f32 0.0, %v637
    %v639 = vpop.f32.mrf.mxu0
    %640 = vmatprep.mubr.f32.mxu0 %v482
    %641 = vmatmul.mubr.f32.gmra.mxu0 %v481
    %v642 = vpop.f32.mrf.mxu0
    %v643 = vadd.f32 0.0, %v642
    %v644 = vpop.f32.mrf.mxu0
    %645 = vmatprep.mubr.f32.mxu0 %v486
    %646 = vmatmul.mubr.f32.gmra.mxu0 %v485
    %v647 = vpop.f32.mrf.mxu0
    %v648 = vadd.f32 0.0, %v647
    %v649 = vpop.f32.mrf.mxu0
    %650 = vmatprep.mubr.f32.mxu0 %v490
    %651 = vmatmul.mubr.f32.gmra.mxu0 %v489
    %v652 = vpop.f32.mrf.mxu0
    %v653 = vadd.f32 0.0, %v652
    %v654 = vpop.f32.mrf.mxu0
    %655 = vmatprep.mubr.f32.mxu0 %v494
    %656 = vmatmul.mubr.f32.gmra.mxu0 %v493
    %v657 = vpop.f32.mrf.mxu0
    %v658 = vadd.f32 0.0, %v657
    %v659 = vpop.f32.mrf.mxu0
    %660 = vmatprep.mubr.f32.mxu0 %v498
    %661 = vmatmul.mubr.f32.gmra.mxu0 %v497
    %v662 = vpop.f32.mrf.mxu0
    %v663 = vadd.f32 0.0, %v662
    %v664 = vpop.f32.mrf.mxu0
    %665 = vdwg.mxu0
    %666 = vmatprep.subr.mxu0 0.0
    %667 = vmatpush1.msra.mxu0 %v554
    %668 = vmatprep.subr.mxu0 0.0
    %669 = vmatpush1.msra.mxu0 %v553
    %670 = vmatprep.subr.mxu0 0.0
    %671 = vmatpush1.msra.mxu0 %v552
    %672 = vmatprep.subr.mxu0 0.0
    %673 = vmatpush1.msra.mxu0 %v551
    %674 = vmatprep.subr.mxu0 0.0
    %675 = vmatpush1.msra.mxu0 %v550
    %676 = vmatprep.subr.mxu0 0.0
    %677 = vmatpush1.msra.mxu0 %v549
    %678 = vmatprep.subr.mxu0 0.0
    %679 = vmatpush1.msra.mxu0 %v548
    %680 = vmatprep.subr.mxu0 0.0
    %681 = vmatpush1.msra.mxu0 %v547
    %682 = vmatprep.subr.mxu0 0.0
    %683 = vmatpush1.msra.mxu0 %v546
    %684 = vmatprep.subr.mxu0 0.0
    %685 = vmatpush1.msra.mxu0 %v545
    %686 = vmatprep.subr.mxu0 0.0
    %687 = vmatpush1.msra.mxu0 %v544
    %688 = vmatprep.subr.mxu0 0.0
    %689 = vmatpush1.msra.mxu0 %v543
    %690 = vmatprep.subr.mxu0 0.0
    %691 = vmatpush1.msra.mxu0 %v542
    %692 = vmatprep.subr.mxu0 0.0
    %693 = vmatpush1.msra.mxu0 %v541
    %694 = vmatprep.subr.mxu0 0.0
    %695 = vmatpush1.msra.mxu0 %v540
    %696 = vmatprep.subr.mxu0 0.0
    %697 = vmatpush1.msra.mxu0 %v539
    %698 = vmatprep.subr.mxu0 0.0
    %699 = vmatpush2.msra.mxu0 %v570
    %700 = vmatprep.subr.mxu0 0.0
    %701 = vmatpush2.msra.mxu0 %v569
    %702 = vmatprep.subr.mxu0 0.0
    %703 = vmatpush2.msra.mxu0 %v568
    %704 = vmatprep.subr.mxu0 0.0
    %705 = vmatpush2.msra.mxu0 %v567
    %706 = vmatprep.subr.mxu0 0.0
    %707 = vmatpush2.msra.mxu0 %v566
    %708 = vmatprep.subr.mxu0 0.0
    %709 = vmatpush2.msra.mxu0 %v565
    %710 = vmatprep.subr.mxu0 0.0
    %711 = vmatpush2.msra.mxu0 %v564
    %712 = vmatprep.subr.mxu0 0.0
    %713 = vmatpush2.msra.mxu0 %v563
    %714 = vmatprep.subr.mxu0 0.0
    %715 = vmatpush2.msra.mxu0 %v562
    %716 = vmatprep.subr.mxu0 0.0
    %717 = vmatpush2.msra.mxu0 %v561
    %718 = vmatprep.subr.mxu0 0.0
    %719 = vmatpush2.msra.mxu0 %v560
    %720 = vmatprep.subr.mxu0 0.0
    %721 = vmatpush2.msra.mxu0 %v559
    %722 = vmatprep.subr.mxu0 0.0
    %723 = vmatpush2.msra.mxu0 %v558
    %724 = vmatprep.subr.mxu0 0.0
    %725 = vmatpush2.msra.mxu0 %v557
    %726 = vmatprep.subr.mxu0 0.0
    %727 = vmatpush2.msra.mxu0 %v556
    %728 = vmatprep.subr.mxu0 0.0
    %729 = vmatpush2.msra.mxu0 %v555
    %730 = vmatprep.mubr.f32.mxu0 %v480
    %731 = vmatmul.mubr.f32.gmra.mxu0 %v479
    %v732 = vpop.f32.mrf.mxu0
    %v733 = vadd.f32 %v638, %v732
    %v734 = vpop.f32.mrf.mxu0
    %735 = vmatprep.mubr.f32.mxu0 %v484
    %736 = vmatmul.mubr.f32.gmra.mxu0 %v483
    %v737 = vpop.f32.mrf.mxu0
    %v738 = vadd.f32 %v643, %v737
    %v739 = vpop.f32.mrf.mxu0
    %740 = vmatprep.mubr.f32.mxu0 %v488
    %741 = vmatmul.mubr.f32.gmra.mxu0 %v487
    %v742 = vpop.f32.mrf.mxu0
    %v743 = vadd.f32 %v648, %v742
    %v744 = vpop.f32.mrf.mxu0
    %745 = vmatprep.mubr.f32.mxu0 %v492
    %746 = vmatmul.mubr.f32.gmra.mxu0 %v491
    %v747 = vpop.f32.mrf.mxu0
    %v748 = vadd.f32 %v653, %v747
    %v749 = vpop.f32.mrf.mxu0
    %750 = vmatprep.mubr.f32.mxu0 %v496
    %751 = vmatmul.mubr.f32.gmra.mxu0 %v495
    %v752 = vpop.f32.mrf.mxu0
    %v753 = vadd.f32 %v658, %v752
    %v754 = vpop.f32.mrf.mxu0
    %755 = vmatprep.mubr.f32.mxu0 %v500
    %756 = vmatmul.mubr.f32.gmra.mxu0 %v499
    %v757 = vpop.f32.mrf.mxu0
    %v758 = vadd.f32 %v663, %v757
    %v759 = vpop.f32.mrf.mxu0
    %760 = vdwg.mxu0
    %v761 = vadd.f32 %v501, %v733
    %v762 = vadd.f32 %v502, %v738
    %v763 = vadd.f32 %v503, %v743
    %v764 = vadd.f32 %v504, %v748
    %v765 = vadd.f32 %v505, %v753
    %v766 = vadd.f32 %v506, %v758
    %767 = vst [vmem:[#allocation3] sm:$0xff] %v761
    %768 = vst [vmem:[#allocation3 + $0x8] sm:$0xff] %v762
    %769 = vst [vmem:[#allocation3 + $0x10] sm:$0xff] %v763
    %770 = vst [vmem:[#allocation3 + $0x18] sm:$0xff] %v764
    %771 = vst [vmem:[#allocation3 + $0x20] sm:$0xff] %v765
    %772 = vst [vmem:[#allocation3 + $0x28] sm:$0xff] %v766
    // Predicated region
    $region46: #{tpu_custom_call.1} parent=1 // pred_check
      %p773 = pneg %p68
    $region47: #{tpu_custom_call.1} parent=1 // pred_check_branch
      %775 = sbr.rel (%p773) target = $region49
    $region48: #{tpu_custom_call.1} parent=1 // pred_region
      %v776 = vld [vmem:[#allocation3] sm:$0xff]
      %v777 = vld [vmem:[#allocation3 + $0x8] sm:$0xff]
      %v778 = vld [vmem:[#allocation3 + $0x10] sm:$0xff]
      %v779 = vld [vmem:[#allocation3 + $0x18] sm:$0xff]
      %v780 = vld [vmem:[#allocation3 + $0x20] sm:$0xff]
      %v781 = vld [vmem:[#allocation3 + $0x28] sm:$0xff]
      %v782 = vld [vmem:[%s6] sm:$0x1]
      %v784 = vlaneseq
      %v785 = vshrl.u32 %v784, 7
      %v786 = vsub.s32 0, %v785
      %v787 = vrot.slane %v782, %v786
      %v789 = vadd.f32 %v776, %v787
      %v790 = vadd.f32 %v777, %v787
      %v791 = vadd.f32 %v778, %v787
      %v792 = vadd.f32 %v779, %v787
      %v793 = vadd.f32 %v780, %v787
      %v794 = vadd.f32 %v781, %v787
      %795 = vst [vmem:[#allocation10] sm:$0xff] %v789
      %796 = vst [vmem:[#allocation10 + $0x8] sm:$0xff] %v790
      %797 = vst [vmem:[#allocation10 + $0x10] sm:$0xff] %v791
      %798 = vst [vmem:[#allocation10 + $0x18] sm:$0xff] %v792
      %799 = vst [vmem:[#allocation10 + $0x20] sm:$0xff] %v793
      %800 = vst [vmem:[#allocation10 + $0x28] sm:$0xff] %v794
    $region49: #{tpu_custom_call.1} parent=1 // pred_fallthru
      _
    // Predicated region
    $region50: #{tpu_custom_call.1} parent=1 // pred_check
      _
    $region51: #{tpu_custom_call.1} parent=1 // pred_check_branch
      %802 = sbr.rel (0) target = $region53
    $region52: #{tpu_custom_call.1} parent=1 // pred_region
      %s804 = ssub.s32 768, 768
      %805 = vsyncadd [#allocation6], %s804
      %s806 = sshll.u32 [#allocation10], 4
      %s807 = int_to_ptr.vmem [resolvable:$true] %s806
      %812 = dma.vmem_to_hbm [thread:$0]  %s807, 768, %s7, [#allocation6], 128, 128, 8
    $region53: #{tpu_custom_call.1} parent=1 // pred_fallthru
      _
    // Predicated region
    $region54: #{tpu_custom_call.1} parent=1 // pred_check
      _
    $region55: #{tpu_custom_call.1} parent=1 // pred_check_branch
      %814 = sbr.rel (0) target = $region57
    $region56: #{tpu_custom_call.1} parent=1 // pred_region
      %815 = dma.done [#allocation6], 768
    $region57: #{tpu_custom_call.1} parent=1 // pred_fallthru
      _
    %816 = vsyncpa [#allocation5], 1
    %817 = vsyncpa [#allocation8], 1
    %818 = vsyncpa [#allocation6], 1

</llo_original>
